<compile_context>
chip_gen: v7x
topology: tpu7x:2x2x1
jax: 0.10.0
libtpu: 0.0.40
codegen_flags: <defaults>
</compile_context>

<pallas_src>
import functools

import jax
import jax.numpy as jnp
from jax.experimental import pallas as pl
from jax.experimental.pallas import tpu as pltpu


def _round_up(x, m):
    return ((x + m - 1) // m) * m


def _score_kernel(z_ref, w1_ref, b1_ref, w2_ref, acc_ref, *,
                  tile_n, n_rows, need_mask):
    """Accumulate per-(metapath, hidden) column sums of w2 * tanh(z W1 + b1)."""
    pid = pl.program_id(0)

    @pl.when(pid == 0)
    def _():
        acc_ref[...] = jnp.zeros_like(acc_ref)

    z = z_ref[...]                                               # (tile_n, M*D)
    # Block-diagonal Linear1 for all metapaths in one MXU matmul, tanh on EUP.
    h = jnp.tanh(
        jnp.dot(z, w1_ref[...], preferred_element_type=jnp.float32)
        + b1_ref[...]
    )                                                            # (tile_n, M*H)
    # Linear2 (H -> 1, no bias) as a VPU multiply; no 1-wide MXU column.
    weighted = h * w2_ref[...]                                   # (tile_n, M*H)

    if need_mask:  # zero the contribution of N-padding rows (last tile only)
        row = pid * tile_n + jax.lax.broadcasted_iota(jnp.int32, (tile_n, 1), 0)
        weighted = jnp.where(row < n_rows, weighted, 0.0)

    acc_ref[...] += jnp.sum(weighted, axis=0, keepdims=True)     # (1, M*H)


def _weighted_sum_kernel(z_ref, beta_ref, o_ref, *, n_paths, d):
    """out = sum_m beta[m] * z[:, m, :] on a lane-dense (tile_n, M*D) tile."""
    zb = z_ref[...] * beta_ref[...]                              # (tile_n, M*D)
    acc = zb[:, 0:d]
    for m in range(1, n_paths):
        acc = acc + zb[:, m * d:(m + 1) * d]
    o_ref[...] = acc.astype(o_ref.dtype)


def semantic_attention(z, w1, b1, w2, *, tile_n=512):
    """z: (N, M, D) f32; w1: (D, H); b1: (H,); w2: (H,). Returns (N, D)."""
    N, M, D = z.shape
    H = w1.shape[1]

    # Lane-dense view of z for the DMA path.
    z_flat = z.reshape(N, M * D)

    # Tile N (multiple of 8 sublanes); pad N up to a whole number of tiles.
    tile_n = min(tile_n, _round_up(N, 8))
    n_pad = _round_up(N, tile_n)
    if n_pad != N:
        z_flat = jnp.pad(z_flat, ((0, n_pad - N), (0, 0)))
    grid = (n_pad // tile_n,)

    # Block-diagonal W1 so a single (tile_n, M*D) @ (M*D, M*H) matmul handles all
    # metapaths; b1 / w2 tiled to (1, M*H) so they broadcast along lanes.
    w1_big = jnp.kron(jnp.eye(M, dtype=w1.dtype), w1)            # (M*D, M*H)
    b1_t = jnp.tile(b1.reshape(1, H), (1, M))                    # (1, M*H)
    w2_t = jnp.tile(w2.reshape(1, H), (1, M))                    # (1, M*H)

    # ---- phase 1: per-metapath score sums over all nodes --------------------
    col_sums = pl.pallas_call(
        functools.partial(_score_kernel, tile_n=tile_n, n_rows=N,
                          need_mask=(n_pad != N)),
        out_shape=jax.ShapeDtypeStruct((1, M * H), jnp.float32),
        grid_spec=pltpu.PrefetchScalarGridSpec(
            num_scalar_prefetch=0,
            grid=grid,
            in_specs=[
                pl.BlockSpec((tile_n, M * D), lambda i: (i, 0)),
                pl.BlockSpec((M * D, M * H), lambda i: (0, 0)),
                pl.BlockSpec((1, M * H), lambda i: (0, 0)),
                pl.BlockSpec((1, M * H), lambda i: (0, 0)),
            ],
            out_specs=pl.BlockSpec((1, M * H), lambda i: (0, 0)),
        ),
        compiler_params=pltpu.CompilerParams(
            dimension_semantics=("arbitrary",)),
    )(z_flat, w1_big, b1_t, w2_t)

    # ---- mean over nodes + softmax over metapaths (M scalars): plain JAX ----
    scores = jnp.sum(col_sums.reshape(M, H), axis=1) / N         # (M,)
    beta = jax.nn.softmax(scores)                                # (M,)
    beta_expand = jnp.repeat(beta, D).reshape(1, M * D)          # lane-aligned with z_flat

    # ---- phase 2: beta-weighted sum over metapaths, tiled over N ------------
    out_pad = pl.pallas_call(
        functools.partial(_weighted_sum_kernel, n_paths=M, d=D),
        out_shape=jax.ShapeDtypeStruct((n_pad, D), z.dtype),
        grid_spec=pltpu.PrefetchScalarGridSpec(
            num_scalar_prefetch=0,
            grid=grid,
            in_specs=[
                pl.BlockSpec((tile_n, M * D), lambda i: (i, 0)),
                pl.BlockSpec((1, M * D), lambda i: (0, 0)),
            ],
            out_specs=pl.BlockSpec((tile_n, D), lambda i: (i, 0)),
        ),
        compiler_params=pltpu.CompilerParams(
            dimension_semantics=("parallel",)),
    )(z_flat, beta_expand)

    return out_pad[:N]


def semantic_attention_ref(z, w1, b1, w2):
    # Pure-JAX reference of the PyTorch forward.
    h = jnp.tanh(jnp.einsum("nmd,dh->nmh", z, w1) + b1)          # (N, M, H)
    scores = jnp.einsum("nmh,h->nm", h, w2)                      # (N, M)
    w = jnp.mean(scores, axis=0)                                 # (M,)
    beta = jax.nn.softmax(w, axis=0)                             # (M,)
    return jnp.sum(beta[None, :, None] * z, axis=1)              # (N, D)


if __name__ == "__main__":
    key = jax.random.PRNGKey(0)
    k_z, k_w1, k_b1, k_w2 = jax.random.split(key, 4)

    # num_nodes, num_metapaths, in_size, hidden_size (small demo config)
    N, M, D, H = 100, 4, 32, 32

    # z as a "list" of M tensors (N, D), then stacked like torch.stack(z, 1).
    z_list = [jax.random.normal(jax.random.fold_in(k_z, m), (N, D), jnp.float32)
              for m in range(M)]
    z = jnp.stack(z_list, axis=1)                                # (N, M, D)

    # Deterministic synthetic parameters (stored (in, out)).
    w1 = jax.random.normal(k_w1, (D, H), jnp.float32) * 0.1
    b1 = jax.random.normal(k_b1, (H,), jnp.float32) * 0.1
    w2 = jax.random.normal(k_w2, (H,), jnp.float32) * 0.1

    # Small tile so the demo exercises multi-tile accumulation + row masking.
    out = semantic_attention(z, w1, b1, w2, tile_n=32)
    out = jax.block_until_ready(out)

    ref = semantic_attention_ref(z, w1, b1, w2)
    assert out.shape == (N, D)
    assert jnp.allclose(out, ref, atol=1e-5, rtol=1e-5), "mismatch vs reference"

    print("KERNEL_OK")
</pallas_src>

<mosaic_0001>
module attributes {stable_mosaic.version = 11 : i64} {
  func.func @_score_kernel(%arg0: i32, %arg1: memref<32x128xf32, #tpu.memory_space<vmem>>, %arg2: memref<128x128xf32, #tpu.memory_space<vmem>>, %arg3: memref<1x128xf32, #tpu.memory_space<vmem>>, %arg4: memref<1x128xf32, #tpu.memory_space<vmem>>, %arg5: memref<1x128xf32, #tpu.memory_space<vmem>>) attributes {dimension_semantics = [#tpu.dimension_semantics<arbitrary>], iteration_bounds = array<i64: 4>, scalar_prefetch = 0 : i64, scratch_operands = 0 : i64, tpu.core_type = #tpu.core_type<tc>, window_params = [{transform_indices = @transform_0, window_bounds = array<i64: 32, 128>}, {pipeline_mode = #tpu.pipeline_mode<synchronous>, transform_indices = @transform_1, window_bounds = array<i64: 128, 128>}, {pipeline_mode = #tpu.pipeline_mode<synchronous>, transform_indices = @transform_2, window_bounds = array<i64: 1, 128>}, {pipeline_mode = #tpu.pipeline_mode<synchronous>, transform_indices = @transform_3, window_bounds = array<i64: 1, 128>}, {pipeline_mode = #tpu.pipeline_mode<synchronous>, transform_indices = @transform_4, window_bounds = array<i64: 1, 128>}]} {
    %c0_i32 = arith.constant 0 : i32
    %0 = arith.cmpi eq, %arg0, %c0_i32 : i32
    %1 = arith.extui %0 : i1 to i32
    %c0_i32_0 = arith.constant 0 : i32
    %2 = arith.cmpi ne, %1, %c0_i32_0 : i32
    scf.if %2 {
      %cst_14 = arith.constant 0.000000e+00 : f32
      %28 = vector.broadcast %cst_14 : f32 to vector<1x128xf32>
      %c0_15 = arith.constant 0 : index
      %c0_16 = arith.constant 0 : index
      %29 = vector.load %arg5[%c0_15, %c0_16] : memref<1x128xf32, #tpu.memory_space<vmem>>, vector<1x128xf32>
      tpu.vector_store %arg5[%c0_15, %c0_16], %28 {strides = array<i32>} : memref<1x128xf32, #tpu.memory_space<vmem>>, vector<1x128xf32>,
    } else {
    }
    %c0 = arith.constant 0 : index
    %c0_1 = arith.constant 0 : index
    %3 = vector.load %arg1[%c0, %c0_1] : memref<32x128xf32, #tpu.memory_space<vmem>>, vector<32x128xf32>
    %c0_2 = arith.constant 0 : index
    %c0_3 = arith.constant 0 : index
    %4 = vector.load %arg2[%c0_2, %c0_3] : memref<128x128xf32, #tpu.memory_space<vmem>>, vector<128x128xf32>
    %cst = arith.constant dense<0.000000e+00> : vector<32x128xf32>
    %5 = tpu.matmul %3, %4, %cst {dimension_numbers = #tpu.dot_dimension_numbers<[1], [0], [0], [1], [0, 0, 1, 1], [], []>} : vector<32x128xf32>, vector<128x128xf32>, vector<32x128xf32> -> vector<32x128xf32>
    %c0_4 = arith.constant 0 : index
    %c0_5 = arith.constant 0 : index
    %6 = vector.load %arg3[%c0_4, %c0_5] : memref<1x128xf32, #tpu.memory_space<vmem>>, vector<1x128xf32>
    %7 = vector.broadcast %6 : vector<1x128xf32> to vector<32x128xf32>
    %8 = arith.addf %5, %7 : vector<32x128xf32>
    %9 = math.tanh %8 : vector<32x128xf32>
    %c0_6 = arith.constant 0 : index
    %c0_7 = arith.constant 0 : index
    %10 = vector.load %arg4[%c0_6, %c0_7] : memref<1x128xf32, #tpu.memory_space<vmem>>, vector<1x128xf32>
    %11 = vector.broadcast %10 : vector<1x128xf32> to vector<32x128xf32>
    %12 = arith.mulf %9, %11 : vector<32x128xf32>
    %c32_i32 = arith.constant 32 : i32
    %13 = arith.muli %arg0, %c32_i32 : i32
    %14 = tpu.iota {dimensions = array<i32: 0>} : vector<32x1xi32>
    %15 = vector.broadcast %13 : i32 to vector<32x1xi32>
    %16 = arith.addi %15, %14 : vector<32x1xi32>
    %c100_i32 = arith.constant 100 : i32
    %17 = vector.broadcast %c100_i32 : i32 to vector<32x1xi32>
    %18 = arith.cmpi slt, %16, %17 : vector<32x1xi32>
    %cst_8 = arith.constant 0.000000e+00 : f32
    %19 = vector.shape_cast %18 : vector<32x1xi1> to vector<32x1xi1>
    %20 = vector.broadcast %19 : vector<32x1xi1> to vector<32x128xi1>
    %21 = vector.broadcast %cst_8 : f32 to vector<32x128xf32>
    %22 = arith.select %20, %12, %21 : vector<32x128xi1>, vector<32x128xf32>
    %c0_9 = arith.constant 0 : index
    %c0_10 = arith.constant 0 : index
    %23 = vector.load %arg5[%c0_9, %c0_10] : memref<1x128xf32, #tpu.memory_space<vmem>>, vector<1x128xf32>
    %cst_11 = arith.constant dense<0.000000e+00> : vector<128xf32>
    %24 = vector.multi_reduction <add>, %22, %cst_11 [0] : vector<32x128xf32> to vector<128xf32>
    %25 = vector.shape_cast %24 : vector<128xf32> to vector<1x128xf32>
    %26 = arith.addf %23, %25 : vector<1x128xf32>
    %c0_12 = arith.constant 0 : index
    %c0_13 = arith.constant 0 : index
    %27 = vector.load %arg5[%c0_12, %c0_13] : memref<1x128xf32, #tpu.memory_space<vmem>>, vector<1x128xf32>
    tpu.vector_store %arg5[%c0_12, %c0_13], %26 {strides = array<i32>} : memref<1x128xf32, #tpu.memory_space<vmem>>, vector<1x128xf32>,
    return
  }
  func.func @transform_0(%arg0: i32) -> (i32, i32) {
    %c0_i32 = arith.constant 0 : i32
    %c0_i32_0 = arith.constant 0 : i32
    return %arg0, %c0_i32 : i32, i32
  }
  func.func @transform_1(%arg0: i32) -> (i32, i32) {
    %c0_i32 = arith.constant 0 : i32
    %c0_i32_0 = arith.constant 0 : i32
    %c0_i32_1 = arith.constant 0 : i32
    return %c0_i32, %c0_i32_0 : i32, i32
  }
  func.func @transform_2(%arg0: i32) -> (i32, i32) {
    %c0_i32 = arith.constant 0 : i32
    %c0_i32_0 = arith.constant 0 : i32
    %c0_i32_1 = arith.constant 0 : i32
    return %c0_i32, %c0_i32_0 : i32, i32
  }
  func.func @transform_3(%arg0: i32) -> (i32, i32) {
    %c0_i32 = arith.constant 0 : i32
    %c0_i32_0 = arith.constant 0 : i32
    %c0_i32_1 = arith.constant 0 : i32
    return %c0_i32, %c0_i32_0 : i32, i32
  }
  func.func @transform_4(%arg0: i32) -> (i32, i32) {
    %c0_i32 = arith.constant 0 : i32
    %c0_i32_0 = arith.constant 0 : i32
    %c0_i32_1 = arith.constant 0 : i32
    return %c0_i32, %c0_i32_0 : i32, i32
  }
}

</mosaic_0001>

<llo_original>
// kernel: tpu_custom_call.1
$region0: #{tpu_custom_call.1}
  #allocation0 [shape = 'u32[]', space=smem, size = 0x4, offset = 0x4, fixed_abs, tag = 'smem constant byte address 0x4 - core index']
  #allocation1 [shape = 'u32[144,128]{1,0:T(1,128)}', space=vmem, size = 0x12000, scoped, tag = 'internal scratch']
  %s0 = inlined_call_operand.hbm [shape: f32[128,128], index: 0, kind: input, shape index: {}]
  %s1 = inlined_call_operand.hbm [shape: f32[128,128], index: 1, kind: input, shape index: {}]
  %s2 = inlined_call_operand.vmem [shape: f32[1,128], index: 2, kind: input, shape index: {}]
  %s3 = inlined_call_operand.vmem [shape: f32[1,128], index: 3, kind: input, shape index: {}]
  %s4 = inlined_call_operand.hbm [shape: f32[1,128], index: 4, kind: output, shape index: {}]
  %s5 = sld [smem:[#allocation0]]
  $region61: #{tpu_custom_call.1} parent=0
    _
  %s7 = ssub.s32 1, %s5
  %s8 = scalar_select 0, %s7, %s5
  $region1: #{tpu_custom_call.1} parent=0
    #allocation2 [shape = 'u8[32768]{0}', space=vmem, size = 0x8000, scoped, tag = 'input window, operand 0']
    #allocation3 [shape = 's32[2]{0}', space=sflag, size = 0x8, scoped, tag = 'scoped memory for tpu_custom_call.1']
    #allocation4 [shape = 's32[2]{0}', space=sflag, size = 0x8, scoped, tag = 'scoped memory for tpu_custom_call.1']
    #allocation5 [shape = 'u8[65536]{0}', space=vmem, size = 0x10000, scoped, tag = 'input window, operand 1, single buffered']
    #allocation6 [shape = 's32[1]{0}', space=sflag, size = 0x4, scoped, tag = 'scoped memory for tpu_custom_call.1']
    #allocation7 [shape = 'u8[512]{0}', space=vmem, size = 0x400, scoped, tag = 'output window, operand 0, single buffered']
    %9 = vsyncpa [#allocation3], 0
    %s10 = scalar_lea.sflag [#allocation3], 1
    %11 = vsyncpa %s10, 0
    %12 = vsyncpa [#allocation6], 0
    %13 = vsyncpa [#allocation4], 0
    loop: start=0, step=1, limit=6
    $region2: #{tpu_custom_call.1} parent=1 // loop_pre_header
      _
    $region3: #{tpu_custom_call.1} parent=1 // loop_header
      %s15 = sphi 0, %s19
      %p16 = scmp.ge.s32.totalorder %s15, 6
      %s25 = sphi 0, %s27
      %s28 = sphi 0, %s25
      %s29 = sphi 0, %s28
      %s45 = sphi 0, %s29
      %s49 = sphi 0, %s49
      %s51 = sphi 0, %s49
      %s52 = sphi 0, %s51
      %s66 = sphi 0, %s52
      %s70 = sphi 0, %s70
      %s72 = sphi 0, %s70
      %s73 = sphi 0, %s72
      %s87 = sphi 0, %s73
      %s91 = sphi 0, %s91
      %s93 = sphi 0, %s91
      %s94 = sphi 0, %s93
      %s108 = sphi 0, %s94
      %s112 = sphi 0, %s112
      %s114 = sphi 0, %s112
      %s115 = sphi 0, %s114
      %s129 = sphi 0, %s115
    $region4: #{tpu_custom_call.1} parent=1 // loop_header_branch
      %18 = sbr.rel (%p16) target = $region8
    $region5: #{tpu_custom_call.1} parent=1 // loop_body
      %s20 = ssub.s32 %s15, 1
      %s21 = ssub.s32 %s15, 2
      %s22 = sadd.s32 %s15, 1
      %s23 = ssub.s32 %s15, %s22
      %p24 = scmp.eq.s32.totalorder %s23, 0
      %s26 = sadd.s32 %s25, 1
      %s27 = scalar_select %p24, %s25, %s26
      %p30 = pneg %p24
      %p31 = scmp.eq.s32.totalorder %s15, 3
      %p32 = por %p30, %p31
      %p33 = scmp.ne.s32.totalorder %s25, %s28
      %p34 = scmp.eq.s32.totalorder %s15, 0
      %p35 = por %p33, %p34
      %p36 = scmp.ne.s32.totalorder %s25, %s28
      %p37 = scmp.eq.s32.totalorder %s20, 3
      %p38 = por %p36, %p37
      %p39 = scmp.ne.s32.totalorder %s28, %s29
      %p40 = scmp.eq.s32.totalorder %s20, 0
      %p41 = por %p39, %p40
      %p42 = scmp.ne.s32.totalorder %s28, %s29
      %p43 = scmp.eq.s32.totalorder %s21, 3
      %p44 = por %p42, %p43
      %p46 = scmp.ne.s32.totalorder %s29, %s45
      %p47 = scmp.eq.s32.totalorder %s21, 0
      %p48 = por %p46, %p47
      %s50 = sadd.s32 %s49, 1
      %p53 = scmp.eq.s32.totalorder %s15, 3
      %p54 = scmp.ne.s32.totalorder %s49, %s51
      %p55 = scmp.eq.s32.totalorder %s15, 0
      %p56 = por %p54, %p55
      %p57 = scmp.ne.s32.totalorder %s49, %s51
      %p58 = scmp.eq.s32.totalorder %s20, 3
      %p59 = por %p57, %p58
      %p60 = scmp.ne.s32.totalorder %s51, %s52
      %p61 = scmp.eq.s32.totalorder %s20, 0
      %p62 = por %p60, %p61
      %p63 = scmp.ne.s32.totalorder %s51, %s52
      %p64 = scmp.eq.s32.totalorder %s21, 3
      %p65 = por %p63, %p64
      %p67 = scmp.ne.s32.totalorder %s52, %s66
      %p68 = scmp.eq.s32.totalorder %s21, 0
      %p69 = por %p67, %p68
      %s71 = sadd.s32 %s70, 1
      %p74 = scmp.eq.s32.totalorder %s15, 3
      %p75 = scmp.ne.s32.totalorder %s70, %s72
      %p76 = scmp.eq.s32.totalorder %s15, 0
      %p77 = por %p75, %p76
      %p78 = scmp.ne.s32.totalorder %s70, %s72
      %p79 = scmp.eq.s32.totalorder %s20, 3
      %p80 = por %p78, %p79
      %p81 = scmp.ne.s32.totalorder %s72, %s73
      %p82 = scmp.eq.s32.totalorder %s20, 0
      %p83 = por %p81, %p82
      %p84 = scmp.ne.s32.totalorder %s72, %s73
      %p85 = scmp.eq.s32.totalorder %s21, 3
      %p86 = por %p84, %p85
      %p88 = scmp.ne.s32.totalorder %s73, %s87
      %p89 = scmp.eq.s32.totalorder %s21, 0
      %p90 = por %p88, %p89
      %s92 = sadd.s32 %s91, 1
      %p95 = scmp.eq.s32.totalorder %s15, 3
      %p96 = scmp.ne.s32.totalorder %s91, %s93
      %p97 = scmp.eq.s32.totalorder %s15, 0
      %p98 = por %p96, %p97
      %p99 = scmp.ne.s32.totalorder %s91, %s93
      %p100 = scmp.eq.s32.totalorder %s20, 3
      %p101 = por %p99, %p100
      %p102 = scmp.ne.s32.totalorder %s93, %s94
      %p103 = scmp.eq.s32.totalorder %s20, 0
      %p104 = por %p102, %p103
      %p105 = scmp.ne.s32.totalorder %s93, %s94
      %p106 = scmp.eq.s32.totalorder %s21, 3
      %p107 = por %p105, %p106
      %p109 = scmp.ne.s32.totalorder %s94, %s108
      %p110 = scmp.eq.s32.totalorder %s21, 0
      %p111 = por %p109, %p110
      %s113 = sadd.s32 %s112, 1
      %p116 = scmp.eq.s32.totalorder %s15, 3
      %p117 = scmp.ne.s32.totalorder %s112, %s114
      %p118 = scmp.eq.s32.totalorder %s15, 0
      %p119 = por %p117, %p118
      %p120 = scmp.ne.s32.totalorder %s112, %s114
      %p121 = scmp.eq.s32.totalorder %s20, 3
      %p122 = por %p120, %p121
      %p123 = scmp.ne.s32.totalorder %s114, %s115
      %p124 = scmp.eq.s32.totalorder %s20, 0
      %p125 = por %p123, %p124
      %p126 = scmp.ne.s32.totalorder %s114, %s115
      %p127 = scmp.eq.s32.totalorder %s21, 3
      %p128 = por %p126, %p127
      %p130 = scmp.ne.s32.totalorder %s115, %s129
      %p131 = scmp.eq.s32.totalorder %s21, 0
      %p132 = por %p130, %p131
      %p133 = scmp.le.s32.totalorder 1, %s15
      %p134 = scmp.lt.s32.totalorder %s15, 5
      %p135 = pnand %p133, %p134
      %p136 = pneg %p135
      // Predicated region
      $region9: #{tpu_custom_call.1} parent=5 // pred_check
        _
      $region10: #{tpu_custom_call.1} parent=5 // pred_check_branch
        %138 = sbr.rel (%p135) target = $region12
      $region11: #{tpu_custom_call.1} parent=5 // pred_region
        %s139 = ssub.s32 %s15, 1
        // Predicated region
        $region13: #{tpu_custom_call.1} parent=11 // pred_check
          %p140 = pneg %p62
        $region14: #{tpu_custom_call.1} parent=11 // pred_check_branch
          %142 = sbr.rel (%p140) target = $region16
        $region15: #{tpu_custom_call.1} parent=11 // pred_region
          %s144 = ssub.s32 2048, 2048
          %145 = vsyncadd [#allocation6], %s144
          %s146 = sshll.u32 [#allocation5], 4
          %s147 = int_to_ptr.vmem [resolvable:$true] %s146
          %152 = dma.hbm_to_vmem [thread:$0]  %s1, 2048, %s147, [#allocation6], 128, 128, 8
        $region16: #{tpu_custom_call.1} parent=11 // pred_fallthru
          _
        // Predicated region
        $region17: #{tpu_custom_call.1} parent=11 // pred_check
          %p153 = pneg %p83
        $region18: #{tpu_custom_call.1} parent=11 // pred_check_branch
          %155 = sbr.rel (%p153) target = $region20
        $region19: #{tpu_custom_call.1} parent=11 // pred_region
          _
        $region20: #{tpu_custom_call.1} parent=11 // pred_fallthru
          _
        // Predicated region
        $region21: #{tpu_custom_call.1} parent=11 // pred_check
          %p156 = pneg %p104
        $region22: #{tpu_custom_call.1} parent=11 // pred_check_branch
          %158 = sbr.rel (%p156) target = $region24
        $region23: #{tpu_custom_call.1} parent=11 // pred_region
          _
        $region24: #{tpu_custom_call.1} parent=11 // pred_fallthru
          _
      $region12: #{tpu_custom_call.1} parent=5 // pred_fallthru
        _
      %p159 = scmp.lt.s32.totalorder %s15, 4
      // Predicated region
      $region25: #{tpu_custom_call.1} parent=5 // pred_check
        %p160 = pneg %p159
      $region26: #{tpu_custom_call.1} parent=5 // pred_check_branch
        %162 = sbr.rel (%p160) target = $region28
      $region27: #{tpu_custom_call.1} parent=5 // pred_region
        // Predicated region
        $region29: #{tpu_custom_call.1} parent=27 // pred_check
          %p163 = pneg %p35
        $region30: #{tpu_custom_call.1} parent=27 // pred_check_branch
          %165 = sbr.rel (%p163) target = $region32
        $region31: #{tpu_custom_call.1} parent=27 // pred_region
          %s166 = sand.u32 %s25, 1
          %s167 = scalar_lea.sflag [#allocation3], %s166
          %s168 = sand.u32 %s25, 1
          %s169 = smul.addr %s168, 32
          %s170 = scalar_lea.vmem [#allocation2], %s169
          %s171 = smul.u32 4, %s15
          %s173 = ssub.s32 512, 512
          %174 = vsyncadd %s167, %s173
          %s175 = smul.addr %s171, 128
          %s176 = scalar_lea.hbm %s0, %s175
          %s177 = sshll.u32 %s170, 4
          %s178 = int_to_ptr.vmem [resolvable:$true] %s177
          %183 = dma.hbm_to_vmem [thread:$0]  %s176, 512, %s178, %s167, 128, 128, 8
        $region32: #{tpu_custom_call.1} parent=27 // pred_fallthru
          _
      $region28: #{tpu_custom_call.1} parent=5 // pred_fallthru
        _
      %p184 = scmp.le.s32.totalorder 1, %s15
      %p185 = scmp.lt.s32.totalorder %s15, 5
      %p186 = pnand %p184, %p185
      %p187 = pneg %p186
      // Predicated region
      $region33: #{tpu_custom_call.1} parent=5 // pred_check
        _
      $region34: #{tpu_custom_call.1} parent=5 // pred_check_branch
        %189 = sbr.rel (%p186) target = $region36
      $region35: #{tpu_custom_call.1} parent=5 // pred_region
        %s190 = ssub.s32 %s15, 1
        %s191 = sand.u32 %s28, 1
        %s192 = scalar_lea.sflag [#allocation3], %s191
        %s193 = sand.u32 %s28, 1
        %s194 = smul.addr %s193, 32
        %s195 = scalar_lea.vmem [#allocation2], %s194
        // Predicated region
        $region37: #{tpu_custom_call.1} parent=35 // pred_check
          %p196 = pneg %p41
        $region38: #{tpu_custom_call.1} parent=35 // pred_check_branch
          %198 = sbr.rel (%p196) target = $region40
        $region39: #{tpu_custom_call.1} parent=35 // pred_region
          %199 = dma.done %s192, 512
        $region40: #{tpu_custom_call.1} parent=35 // pred_fallthru
          _
        // Predicated region
        $region41: #{tpu_custom_call.1} parent=35 // pred_check
          %p200 = pneg %p62
        $region42: #{tpu_custom_call.1} parent=35 // pred_check_branch
          %202 = sbr.rel (%p200) target = $region44
        $region43: #{tpu_custom_call.1} parent=35 // pred_region
          %203 = dma.done [#allocation6], 2048
        $region44: #{tpu_custom_call.1} parent=35 // pred_fallthru
          _
        %s204 = sand.u32 %s28, 1
        %s205 = scalar_lea.sflag [#allocation3], %s204
        %s206 = sand.u32 %s28, 1
        %s207 = smul.addr %s206, 32
        %s208 = scalar_lea.vmem [#allocation2], %s207
        %p209 = pneg %p41
        %p210 = pneg %p38
        %p211 = pneg %p62
        %p212 = pneg %p59
        %p213 = pneg %p83
        %p214 = pneg %p80
        %p215 = pneg %p104
        %p216 = pneg %p101
        %p217 = pneg %p125
        %p218 = pneg %p122
        %s219 = smul.u32 4, %s20
        %p220 = scmp.eq.s32.totalorder %s20, 0
        // Predicated region
        $region45: #{tpu_custom_call.1} parent=35 // pred_check
          %p221 = pneg %p220
        $region46: #{tpu_custom_call.1} parent=35 // pred_check_branch
          %223 = sbr.rel (%p221) target = $region48
        $region47: #{tpu_custom_call.1} parent=35 // pred_region
          %224 = vst [vmem:[#allocation7] sm:$0x1] 0.0
        $region48: #{tpu_custom_call.1} parent=35 // pred_fallthru
          _
        %v225 = vld [vmem:[%s195] sm:$0xff]
        %v226 = vld [vmem:[%s195 + $0x8] sm:$0xff]
        %v227 = vld [vmem:[%s195 + $0x10] sm:$0xff]
        %v228 = vld [vmem:[%s195 + $0x18] sm:$0xff]
        %v229 = vld [vmem:[#allocation5] sm:$0xff]
        %v230 = vld [vmem:[#allocation5 + $0x8] sm:$0xff]
        %v231 = vld [vmem:[#allocation5 + $0x10] sm:$0xff]
        %v232 = vld [vmem:[#allocation5 + $0x18] sm:$0xff]
        %v233 = vld [vmem:[#allocation5 + $0x20] sm:$0xff]
        %v234 = vld [vmem:[#allocation5 + $0x28] sm:$0xff]
        %v235 = vld [vmem:[#allocation5 + $0x30] sm:$0xff]
        %v236 = vld [vmem:[#allocation5 + $0x38] sm:$0xff]
        %v237 = vld [vmem:[#allocation5 + $0x40] sm:$0xff]
        %v238 = vld [vmem:[#allocation5 + $0x48] sm:$0xff]
        %v239 = vld [vmem:[#allocation5 + $0x50] sm:$0xff]
        %v240 = vld [vmem:[#allocation5 + $0x58] sm:$0xff]
        %v241 = vld [vmem:[#allocation5 + $0x60] sm:$0xff]
        %v242 = vld [vmem:[#allocation5 + $0x68] sm:$0xff]
        %v243 = vld [vmem:[#allocation5 + $0x70] sm:$0xff]
        %v244 = vld [vmem:[#allocation5 + $0x78] sm:$0xff]
        %v245 = vld [vmem:[%s2] sm:$0x1]
        %v247 = vlaneseq
        %v248 = vshrl.u32 %v247, 7
        %v249 = vsub.s32 0, %v248
        %v250 = vrot.slane %v245, %v249
        %252 = vmatprep.subr.mxu0 0.0
        %253 = vmatpush1.msra.mxu0 %v229
        %254 = vmatprep.subr.mxu0 0.0
        %255 = vmatpush1.msra.mxu0 %v230
        %256 = vmatprep.subr.mxu0 0.0
        %257 = vmatpush1.msra.mxu0 %v231
        %258 = vmatprep.subr.mxu0 0.0
        %259 = vmatpush1.msra.mxu0 %v232
        %260 = vmatprep.subr.mxu0 0.0
        %261 = vmatpush1.msra.mxu0 %v233
        %262 = vmatprep.subr.mxu0 0.0
        %263 = vmatpush1.msra.mxu0 %v234
        %264 = vmatprep.subr.mxu0 0.0
        %265 = vmatpush1.msra.mxu0 %v235
        %266 = vmatprep.subr.mxu0 0.0
        %267 = vmatpush1.msra.mxu0 %v236
        %268 = vmatprep.subr.mxu0 0.0
        %269 = vmatpush1.msra.mxu0 %v237
        %270 = vmatprep.subr.mxu0 0.0
        %271 = vmatpush1.msra.mxu0 %v238
        %272 = vmatprep.subr.mxu0 0.0
        %273 = vmatpush1.msra.mxu0 %v239
        %274 = vmatprep.subr.mxu0 0.0
        %275 = vmatpush1.msra.mxu0 %v240
        %276 = vmatprep.subr.mxu0 0.0
        %277 = vmatpush1.msra.mxu0 %v241
        %278 = vmatprep.subr.mxu0 0.0
        %279 = vmatpush1.msra.mxu0 %v242
        %280 = vmatprep.subr.mxu0 0.0
        %281 = vmatpush1.msra.mxu0 %v243
        %282 = vmatprep.subr.mxu0 0.0
        %283 = vmatpush1.msra.mxu0 %v244
        %284 = vmatprep.subr.mxu0 0.0
        %285 = vmatpush1.msra.mxu0 0.0
        %286 = vmatprep.subr.mxu0 0.0
        %287 = vmatpush1.msra.mxu0 0.0
        %288 = vmatprep.subr.mxu0 0.0
        %289 = vmatpush1.msra.mxu0 0.0
        %290 = vmatprep.subr.mxu0 0.0
        %291 = vmatpush1.msra.mxu0 0.0
        %292 = vmatprep.subr.mxu0 0.0
        %293 = vmatpush1.msra.mxu0 0.0
        %294 = vmatprep.subr.mxu0 0.0
        %295 = vmatpush1.msra.mxu0 0.0
        %296 = vmatprep.subr.mxu0 0.0
        %297 = vmatpush1.msra.mxu0 0.0
        %298 = vmatprep.subr.mxu0 0.0
        %299 = vmatpush1.msra.mxu0 0.0
        %300 = vmatprep.subr.mxu0 0.0
        %301 = vmatpush1.msra.mxu0 0.0
        %302 = vmatprep.subr.mxu0 0.0
        %303 = vmatpush1.msra.mxu0 0.0
        %304 = vmatprep.subr.mxu0 0.0
        %305 = vmatpush1.msra.mxu0 0.0
        %306 = vmatprep.subr.mxu0 0.0
        %307 = vmatpush1.msra.mxu0 0.0
        %308 = vmatprep.subr.mxu0 0.0
        %309 = vmatpush1.msra.mxu0 0.0
        %310 = vmatprep.subr.mxu0 0.0
        %311 = vmatpush1.msra.mxu0 0.0
        %312 = vmatprep.subr.mxu0 0.0
        %313 = vmatpush1.msra.mxu0 0.0
        %314 = vmatprep.subr.mxu0 0.0
        %315 = vmatpush1.msra.mxu0 0.0
        %316 = vmatprep.mubr.f32.mxu0 0.0
        %317 = vmatmul.mubr.f32.gmra.mrb[0].mxu0 %v225
        %v318 = vpop.f32.mrb[0].mxu0
        %v319 = vadd.f32 %v250, %v318
        %v320 = vpop.f32.mrb[0].mxu0
        %321 = vmatprep.mubr.f32.mxu0 0.0
        %322 = vmatmul.mubr.f32.gmra.mrb[0].mxu0 %v226
        %v323 = vpop.f32.mrb[0].mxu0
        %v324 = vadd.f32 %v250, %v323
        %v325 = vpop.f32.mrb[0].mxu0
        %326 = vmatprep.mubr.f32.mxu0 0.0
        %327 = vmatmul.mubr.f32.gmra.mrb[0].mxu0 %v227
        %v328 = vpop.f32.mrb[0].mxu0
        %v329 = vadd.f32 %v250, %v328
        %v330 = vpop.f32.mrb[0].mxu0
        %331 = vmatprep.mubr.f32.mxu0 0.0
        %332 = vmatmul.mubr.f32.gmra.mrb[0].mxu0 %v228
        %v333 = vpop.f32.mrb[0].mxu0
        %v334 = vadd.f32 %v250, %v333
        %v335 = vpop.f32.mrb[0].mxu0
        %336 = vdwg.mxu0
        %v337 = vtanh.pop %v319
        %v338 = vtanh.pop %v324
        %v339 = vtanh.pop %v329
        %v340 = vtanh.pop %v334
        %v341 = vld [vmem:[%s3] sm:$0x1]
        %v343 = vlaneseq
        %v344 = vshrl.u32 %v343, 7
        %v345 = vsub.s32 0, %v344
        %v346 = vrot.slane %v341, %v345
        %v348 = vmul.f32 %v337, %v346
        %v349 = vmul.f32 %v338, %v346
        %v350 = vmul.f32 %v339, %v346
        %v351 = vmul.f32 %v340, %v346
        %s352 = smul.u32 %s20, 32
        %v353 = vlaneseq
        %v354 = vshrl.u32 %v353, 7
        %v355 = vadd.s32 %v354, 8
        %v356 = vadd.s32 %v354, 16
        %v357 = vadd.s32 %v354, 24
        %v358 = vstv %s352
        %v359 = vadd.s32 %v358, %v354
        %v360 = vadd.s32 %v358, %v355
        %v361 = vadd.s32 %v358, %v356
        %v362 = vadd.s32 %v358, %v357
        %vm363 = vcmp.lt.s32.totalorder %v359, 100
        %vm364 = vcmp.lt.s32.totalorder %v360, 100
        %vm365 = vcmp.lt.s32.totalorder %v361, 100
        %vm366 = vcmp.lt.s32.totalorder %v362, 100
        %v367 = vsel %vm363, 1, 0
        %v368 = vsel %vm364, 1, 0
        %v369 = vsel %vm365, 1, 0
        %v370 = vsel %vm366, 1, 0
        %vm371 = vcmp.eq.s32.totalorder %v367, 1
        %vm372 = vcmp.eq.s32.totalorder %v368, 1
        %vm373 = vcmp.eq.s32.totalorder %v369, 1
        %vm374 = vcmp.eq.s32.totalorder %v370, 1
        %v375 = vsel %vm371, %v348, 0.0
        %v376 = vsel %vm372, %v349, 0.0
        %v377 = vsel %vm373, %v350, 0.0
        %v378 = vsel %vm374, %v351, 0.0
        %v379 = vld [vmem:[#allocation7] sm:$0x1]
        %v380 = vadd.f32 %v375, %v376
        %v381 = vadd.f32 %v380, %v377
        %v382 = vadd.f32 %v381, %v378
        %v383 = vrot.slane %v382, 4
        %v384 = vadd.f32 %v382, %v383
        %v385 = vrot.slane %v384, 2
        %v386 = vadd.f32 %v384, %v385
        %v387 = vrot.slane %v386, 1
        %v388 = vadd.f32 %v386, %v387
        %v389 = vadd.f32 %v379, %v388
        %390 = vst [vmem:[#allocation7] sm:$0x1] %v389
        // Predicated region
        $region49: #{tpu_custom_call.1} parent=35 // pred_check
          %p391 = pneg %p122
        $region50: #{tpu_custom_call.1} parent=35 // pred_check_branch
          %393 = sbr.rel (%p391) target = $region52
        $region51: #{tpu_custom_call.1} parent=35 // pred_region
          %s395 = ssub.s32 16, 16
          %396 = vsyncadd [#allocation4], %s395
          %s398 = sshll.u32 [#allocation7], 4
          %s399 = int_to_ptr.vmem [resolvable:$true] %s398
          %401 = dma.vmem_to_hbm [thread:$0]  %s399, 16, %s4, [#allocation4]
        $region52: #{tpu_custom_call.1} parent=35 // pred_fallthru
          _
        // Predicated region
        $region53: #{tpu_custom_call.1} parent=35 // pred_check
          %p402 = pneg %p122
        $region54: #{tpu_custom_call.1} parent=35 // pred_check_branch
          %404 = sbr.rel (%p402) target = $region56
        $region55: #{tpu_custom_call.1} parent=35 // pred_region
          %405 = dma.done [#allocation4], 16
        $region56: #{tpu_custom_call.1} parent=35 // pred_fallthru
          _
      $region36: #{tpu_custom_call.1} parent=5 // pred_fallthru
        _
      %p406 = scmp.le.s32.totalorder 2, %s15
      // Predicated region
      $region57: #{tpu_custom_call.1} parent=5 // pred_check
        %p407 = pneg %p406
      $region58: #{tpu_custom_call.1} parent=5 // pred_check_branch
        %409 = sbr.rel (%p407) target = $region60
      $region59: #{tpu_custom_call.1} parent=5 // pred_region
        %s410 = ssub.s32 %s15, 2
      $region60: #{tpu_custom_call.1} parent=5 // pred_fallthru
        _
    $region6: #{tpu_custom_call.1} parent=1 // loop_footer
      %s19 = sadd.s32 1, %s15
    $region7: #{tpu_custom_call.1} parent=1 // loop_footer_branch
      %14 = sbr.rel target = $region3
    $region8: #{tpu_custom_call.1} parent=1 // loop_exit
      _
    %411 = vsyncpa [#allocation3], 1
    %s412 = scalar_lea.sflag [#allocation3], 1
    %413 = vsyncpa %s412, 1
    %414 = vsyncpa [#allocation6], 1
    %415 = vsyncpa [#allocation4], 1
    %s416 = scalar_lea.sflag [#allocation4], 1
    %417 = vsyncpa %s416, 1

</llo_original>
